<compile_context>
chip_gen: v5e
topology: v5e:2x2
jax: 0.10.0
libtpu: 0.0.40
codegen_flags: <defaults>
</compile_context>

<pallas_src>
import jax
import jax.numpy as jnp
from jax.experimental import pallas as pl
from jax.experimental.pallas import tpu as pltpu


def _scale_kernel(x_ref, w_ref, o_ref):
    # x_ref: (tr, tc), w_ref: (1, tc) -> broadcast multiply, whole-tile store.
    o_ref[...] = (x_ref[...] * w_ref[...]).astype(o_ref.dtype)


def full_connec_layer(x, weights, *, max_block_rows: int = 512, max_block_cols: int = 2048):
    """out = x * weights  with x:(B,N,H,W), weights:(1,N,H,W)."""
    B, N, H, W = x.shape
    assert weights.shape == (1, N, H, W), f"bad weight shape {weights.shape}"
    D = N * H * W

    # Flatten to a lane-dense 2-D layout (trailing-dim collapse: no copy).
    x2 = x.reshape(B, D)
    w2 = weights.reshape(1, D)

    # Row (sublane) tile: full batch if small (full-dim block always legal),
    # otherwise 512 rows (multiple of 8/16/32 -> legal for f32/bf16/int8 packing).
    tr = B if B <= max_block_rows else max_block_rows
    # Column (lane) tile: full feature dim if it fits (always legal),
    # otherwise a multiple of 128 with a masked partial edge tile.
    tc = D if D <= max_block_cols else max_block_cols

    grid_r = pl.cdiv(B, tr)
    grid_c = pl.cdiv(D, tc)

    # Put the axis with more blocks outermost so megacore (v7x) has >=2 parallel
    # steps to shard across its 2 TensorCores.
    if grid_r >= grid_c:
        grid = (grid_r, grid_c)
        x_map = lambda i, j: (i, j)
        w_map = lambda i, j: (0, j)
    else:
        grid = (grid_c, grid_r)
        x_map = lambda j, i: (i, j)
        w_map = lambda j, i: (0, j)

    itemsize = jnp.dtype(x.dtype).itemsize
    # Pipelined footprint: 2x x-tile + 2x out-tile + 2x weight-tile (double-buffered).
    footprint = (4 * tr * tc + 2 * tc) * itemsize
    vmem_limit = int(min(48 * 1024 * 1024, footprint + 8 * 1024 * 1024))

    out2 = pl.pallas_call(
        _scale_kernel,
        out_shape=jax.ShapeDtypeStruct((B, D), x.dtype),
        grid=grid,
        in_specs=[
            pl.BlockSpec((tr, tc), x_map),   # x tile
            pl.BlockSpec((1, tc), w_map),    # weight tile
        ],
        out_specs=pl.BlockSpec((tr, tc), x_map),
        compiler_params=pltpu.CompilerParams(
            dimension_semantics=("parallel", "parallel"),
            vmem_limit_bytes=vmem_limit,
        ),
        cost_estimate=pl.CostEstimate(
            flops=B * D,
            transcendentals=0,
            bytes_accessed=(2 * B * D + D) * itemsize,
        ),
    )(x2, w2)

    return out2.reshape(B, N, H, W)


if __name__ == "__main__":
    key = jax.random.PRNGKey(0)
    kx, kw = jax.random.split(key)

    B, N, H, W = 2, 4, 16, 16
    x = jax.random.normal(kx, (B, N, H, W), dtype=jnp.float32)
    w = jax.random.normal(kw, (1, N, H, W), dtype=jnp.float32)

    out = jax.jit(full_connec_layer)(x, w)
    out = jax.block_until_ready(out)

    ref = x * w
    assert out.shape == ref.shape, f"shape mismatch {out.shape} vs {ref.shape}"
    assert jnp.allclose(out, ref, rtol=1e-6, atol=1e-6), "kernel output mismatch vs reference"

    print("KERNEL_OK")
</pallas_src>

<mosaic_0001>
module attributes {stable_mosaic.version = 11 : i64} {
  func.func @_scale_kernel(%arg0: i32, %arg1: i32, %arg2: memref<2x1024xf32, #tpu.memory_space<vmem>>, %arg3: memref<1x1024xf32, #tpu.memory_space<vmem>>, %arg4: memref<2x1024xf32, #tpu.memory_space<vmem>>) attributes {dimension_semantics = [#tpu.dimension_semantics<parallel>, #tpu.dimension_semantics<parallel>], iteration_bounds = array<i64: 1, 1>, scalar_prefetch = 0 : i64, scratch_operands = 0 : i64, tpu.core_type = #tpu.core_type<tc>, window_params = [{transform_indices = @transform_0, window_bounds = array<i64: 2, 1024>}, {transform_indices = @transform_1, window_bounds = array<i64: 1, 1024>}, {transform_indices = @transform_2, window_bounds = array<i64: 2, 1024>}]} {
    %c0 = arith.constant 0 : index
    %c0_0 = arith.constant 0 : index
    %0 = vector.load %arg2[%c0, %c0_0] : memref<2x1024xf32, #tpu.memory_space<vmem>>, vector<2x1024xf32>
    %c0_1 = arith.constant 0 : index
    %c0_2 = arith.constant 0 : index
    %1 = vector.load %arg3[%c0_1, %c0_2] : memref<1x1024xf32, #tpu.memory_space<vmem>>, vector<1x1024xf32>
    %2 = vector.broadcast %1 : vector<1x1024xf32> to vector<2x1024xf32>
    %3 = arith.mulf %0, %2 : vector<2x1024xf32>
    %c0_3 = arith.constant 0 : index
    %c0_4 = arith.constant 0 : index
    %4 = vector.load %arg4[%c0_3, %c0_4] : memref<2x1024xf32, #tpu.memory_space<vmem>>, vector<2x1024xf32>
    tpu.vector_store %arg4[%c0_3, %c0_4], %3 {strides = array<i32>} : memref<2x1024xf32, #tpu.memory_space<vmem>>, vector<2x1024xf32>,
    return
  }
  func.func @transform_0(%arg0: i32, %arg1: i32) -> (i32, i32) {
    %c0_i32 = arith.constant 0 : i32
    return %arg0, %arg1 : i32, i32
  }
  func.func @transform_1(%arg0: i32, %arg1: i32) -> (i32, i32) {
    %c0_i32 = arith.constant 0 : i32
    %c0_i32_0 = arith.constant 0 : i32
    return %c0_i32, %arg1 : i32, i32
  }
  func.func @transform_2(%arg0: i32, %arg1: i32) -> (i32, i32) {
    %c0_i32 = arith.constant 0 : i32
    return %arg0, %arg1 : i32, i32
  }
}

</mosaic_0001>

<llo_original>
// kernel: full_connec_layer.1
$region0: #{full_connec_layer.1}
  #allocation0 [shape = 'u32[]', space=smem, size = 0x4, offset = 0x4, fixed_abs, tag = 'smem constant byte address 0x4 - core index']
  #allocation1 [shape = 'u32[72,128]{1,0:T(1,128)}', space=vmem, size = 0x9000, scoped, tag = 'internal scratch']
  %s0 = inlined_call_operand.vmem [shape: f32[2,1024], index: 0, kind: input, shape index: {}]
  %s1 = inlined_call_operand.vmem [shape: f32[1,1024], index: 1, kind: input, shape index: {}]
  %s2 = inlined_call_operand.vmem [shape: f32[2,1024], index: 2, kind: output, shape index: {}]
  %s3 = sld [smem:[#allocation0]]
  $region18: #{full_connec_layer.1} parent=0
    _
  %s5 = ssub.s32 1, %s3
  %s6 = scalar_select 0, %s5, %s3
  // Predicated region
  $region2: #{full_connec_layer.1} parent=0 // pred_check
    _
  $region3: #{full_connec_layer.1} parent=0 // pred_check_branch
    %8 = sbr.rel (0) target = $region5
  $region4: #{full_connec_layer.1} parent=0 // pred_region
    _
  $region5: #{full_connec_layer.1} parent=0 // pred_fallthru
    _
  // Predicated region
  $region6: #{full_connec_layer.1} parent=0 // pred_check
    _
  $region7: #{full_connec_layer.1} parent=0 // pred_check_branch
    %10 = sbr.rel (0) target = $region9
  $region8: #{full_connec_layer.1} parent=0 // pred_region
    _
  $region9: #{full_connec_layer.1} parent=0 // pred_fallthru
    _
  %v11 = vld [vmem:[%s0] sm:$0xff]
  %v12 = vld [vmem:[%s0 + $0x8] sm:$0xff]
  %v13 = vld [vmem:[%s1] sm:$0xff]
  %v15 = vperm.slane %v13, 0
  %v16 = vperm.slane %v13, 1
  %v17 = vperm.slane %v13, 2
  %v18 = vperm.slane %v13, 3
  %v19 = vperm.slane %v13, 4
  %v20 = vperm.slane %v13, 5
  %v21 = vperm.slane %v13, 6
  %v22 = vperm.slane %v13, 7
  %v23 = vrot.slane %v16, 6
  %v24 = vrot.slane %v17, 4
  %v25 = vrot.slane %v18, 2
  %v26 = vrot.slane %v20, 6
  %v27 = vrot.slane %v21, 4
  %v28 = vrot.slane %v22, 2
  %vm29 = vcmask 1041408
  %v30 = vsel %vm29, %v15, %v23
  %vm31 = vcmask 1045508
  %v32 = vsel %vm31, %v24, %v25
  %vm33 = vcmask 1043456
  %v34 = vsel %vm33, %v30, %v32
  %v35 = vsel %vm29, %v19, %v26
  %v36 = vsel %vm31, %v27, %v28
  %v37 = vsel %vm33, %v35, %v36
  %v40 = vmul.f32 %v11, %v34
  %v41 = vmul.f32 %v12, %v37
  %42 = vst [vmem:[%s2] sm:$0xff] %v40
  %43 = vst [vmem:[%s2 + $0x8] sm:$0xff] %v41
  // Predicated region
  $region10: #{full_connec_layer.1} parent=0 // pred_check
    _
  $region11: #{full_connec_layer.1} parent=0 // pred_check_branch
    %45 = sbr.rel (0) target = $region13
  $region12: #{full_connec_layer.1} parent=0 // pred_region
    _
  $region13: #{full_connec_layer.1} parent=0 // pred_fallthru
    _
  // Predicated region
  $region14: #{full_connec_layer.1} parent=0 // pred_check
    _
  $region15: #{full_connec_layer.1} parent=0 // pred_check_branch
    %47 = sbr.rel (0) target = $region17
  $region16: #{full_connec_layer.1} parent=0 // pred_region
    _
  $region17: #{full_connec_layer.1} parent=0 // pred_fallthru
    _

</llo_original>
